<compile_context>
chip_gen: v6e
topology: v6e:2x2x1
jax: 0.10.0
libtpu: 0.0.40
codegen_flags: <defaults>
</compile_context>

<pallas_src>
import math
import functools
import numpy as np
import jax
import jax.numpy as jnp
from jax.experimental import pallas as pl
from jax.experimental.pallas import tpu as pltpu

NUM_LEVELS = 5
_LANE = 128          # f32 lane width
_SUBLANE = 8         # f32 sublane height
_VMEM_BUDGET = 20 * 1024 * 1024   # per-step working-set budget (v7x-safe)


def _round_up(x, m):
    return ((x + m - 1) // m) * m


def _level_params(h, w, level):
    kh = math.ceil(h / level)
    kw = math.ceil(w / level)
    ph = math.floor((kh * level - h + 1) / 2)
    pw = math.floor((kw * level - w + 1) / 2)
    oh = (h + 2 * ph - kh) // kh + 1   # stride_h == kh, ceil_mode=False
    ow = (w + 2 * pw - kw) // kw + 1   # stride_w == kw
    return kh, kw, ph, pw, oh, ow


@functools.lru_cache(maxsize=None)
def _pool_matrix_np(h, w, num_levels):
    """Lane-padded (H*W, F_pad) averaging matrix, true F, per-level sizes."""
    cols = []
    seg_sizes = []
    for i in range(num_levels):
        level = i + 1
        kh, kw, ph, pw, oh, ow = _level_params(h, w, level)
        inv = 1.0 / float(kh * kw)   # count_include_pad=True divisor
        for r_out in range(oh):
            for c_out in range(ow):
                col = np.zeros((h, w), dtype=np.float32)
                r0 = max(r_out * kh - ph, 0)
                r1 = min(r_out * kh - ph + kh, h)
                c0 = max(c_out * kw - pw, 0)
                c1 = min(c_out * kw - pw + kw, w)
                col[r0:r1, c0:c1] = inv
                cols.append(col.reshape(-1))
        seg_sizes.append(oh * ow)
    f = len(cols)
    f_pad = _round_up(f, _LANE)
    mat = np.zeros((h * w, f_pad), dtype=np.float32)
    mat[:, :f] = np.stack(cols, axis=1)
    return mat, f, tuple(seg_sizes)


@functools.lru_cache(maxsize=None)
def _reorder_perm_np(c, f, seg_sizes):
    """Column permutation: kernel layout [c, level, window] -> PyTorch
    flatten order [level, c, window]."""
    perm = []
    off = 0
    for s in seg_sizes:
        for ch in range(c):
            base = ch * f + off
            perm.extend(range(base, base + s))
        off += s
    return np.asarray(perm, dtype=np.int32)


def _choose_tm(m, hw, f_pad):
    """Largest M-tile (multiple of 8, <=1024) whose double-buffered working
    set fits the VMEM budget."""
    tm = min(1024, _round_up(m, _SUBLANE))

    def est(t):
        # 2x bf16 input tile + 2x f32 output tile + 2x bf16 resident W
        return 2 * t * hw * 2 + 2 * t * f_pad * 4 + 2 * hw * f_pad * 2

    while tm > _SUBLANE and est(tm) > _VMEM_BUDGET:
        tm //= 2
    return max(_SUBLANE, _round_up(tm, _SUBLANE))


def spp_kernel(x_ref, w_ref, o_ref):
    # bf16 x bf16 -> f32 accumulation on the MXU.
    o_ref[...] = jnp.dot(x_ref[...], w_ref[...],
                         preferred_element_type=jnp.float32)


@functools.partial(jax.jit, static_argnames=("num_levels",))
def spp_forward(x, num_levels=NUM_LEVELS):
    n, c, h, w = x.shape
    hw = h * w

    w_np, f, seg_sizes = _pool_matrix_np(h, w, num_levels)
    f_pad = w_np.shape[1]
    w_pool = jnp.asarray(w_np).astype(jnp.bfloat16)

    m = n * c
    x_flat = x.reshape(m, hw).astype(jnp.bfloat16)

    tm = _choose_tm(m, hw, f_pad)
    m_pad = _round_up(m, tm)
    if m_pad != m:
        x_flat = jnp.pad(x_flat, ((0, m_pad - m), (0, 0)))

    grid = (m_pad // tm,)
    pooled = pl.pallas_call(
        spp_kernel,
        out_shape=jax.ShapeDtypeStruct((m_pad, f_pad), jnp.float32),
        grid=grid,
        in_specs=[
            pl.BlockSpec((tm, hw), lambda i: (i, 0)),      # streamed x tiles
            pl.BlockSpec((hw, f_pad), lambda i: (0, 0)),   # resident pool matrix
        ],
        out_specs=pl.BlockSpec((tm, f_pad), lambda i: (i, 0)),
        compiler_params=pltpu.CompilerParams(
            dimension_semantics=("parallel",),
            vmem_limit_bytes=32 * 1024 * 1024,
        ),
    )(x_flat, w_pool)

    # Drop row/lane padding, then one gather to PyTorch flatten order.
    pooled = pooled[:m, :f].reshape(n, c * f)
    perm = jnp.asarray(_reorder_perm_np(c, f, seg_sizes))
    return jnp.take(pooled, perm, axis=1)


def spp_reference(x, num_levels=NUM_LEVELS):
    """Pure-JAX f32 reference matching F.avg_pool2d(count_include_pad=True)."""
    n, c, h, w = x.shape
    outs = []
    for i in range(num_levels):
        level = i + 1
        kh, kw, ph, pw, _, _ = _level_params(h, w, level)
        summed = jax.lax.reduce_window(
            x.astype(jnp.float32), 0.0, jax.lax.add,
            window_dimensions=(1, 1, kh, kw),
            window_strides=(1, 1, kh, kw),
            padding=((0, 0), (0, 0), (ph, ph), (pw, pw)))
        outs.append((summed / float(kh * kw)).reshape(n, -1))
    return jnp.concatenate(outs, axis=1)


if __name__ == "__main__":
    key = jax.random.PRNGKey(0)
    x = jax.random.normal(key, (2, 4, 16, 16), dtype=jnp.float32)

    out = jax.block_until_ready(spp_forward(x))
    ref = jax.block_until_ready(spp_reference(x))

    assert out.shape == (2, 4 * (1 + 4 + 9 + 16 + 25)), out.shape
    # bf16 inputs with f32 accumulation: loosen tolerance vs the f32 reference.
    np.testing.assert_allclose(np.asarray(out), np.asarray(ref),
                               rtol=2e-2, atol=2e-2)
    print("KERNEL_OK")
</pallas_src>

<mosaic_0001>
module attributes {stable_mosaic.version = 11 : i64} {
  func.func @spp_kernel(%arg0: i32, %arg1: memref<8x256xbf16, #tpu.memory_space<vmem>>, %arg2: memref<256x128xbf16, #tpu.memory_space<vmem>>, %arg3: memref<8x128xf32, #tpu.memory_space<vmem>>) attributes {dimension_semantics = [#tpu.dimension_semantics<parallel>], iteration_bounds = array<i64: 1>, scalar_prefetch = 0 : i64, scratch_operands = 0 : i64, tpu.core_type = #tpu.core_type<tc>, window_params = [{transform_indices = @transform_0, window_bounds = array<i64: 8, 256>}, {pipeline_mode = #tpu.pipeline_mode<synchronous>, transform_indices = @transform_1, window_bounds = array<i64: 256, 128>}, {transform_indices = @transform_2, window_bounds = array<i64: 8, 128>}]} {
    %c0 = arith.constant 0 : index
    %c0_0 = arith.constant 0 : index
    %0 = vector.load %arg1[%c0, %c0_0] : memref<8x256xbf16, #tpu.memory_space<vmem>>, vector<8x256xbf16>
    %c0_1 = arith.constant 0 : index
    %c0_2 = arith.constant 0 : index
    %1 = vector.load %arg2[%c0_1, %c0_2] : memref<256x128xbf16, #tpu.memory_space<vmem>>, vector<256x128xbf16>
    %cst = arith.constant dense<0.000000e+00> : vector<8x128xf32>
    %2 = tpu.matmul %0, %1, %cst {dimension_numbers = #tpu.dot_dimension_numbers<[1], [0], [0], [1], [0, 0, 1, 1], [], []>} : vector<8x256xbf16>, vector<256x128xbf16>, vector<8x128xf32> -> vector<8x128xf32>
    %c0_3 = arith.constant 0 : index
    %c0_4 = arith.constant 0 : index
    %3 = vector.load %arg3[%c0_3, %c0_4] : memref<8x128xf32, #tpu.memory_space<vmem>>, vector<8x128xf32>
    tpu.vector_store %arg3[%c0_3, %c0_4], %2 {strides = array<i32>} : memref<8x128xf32, #tpu.memory_space<vmem>>, vector<8x128xf32>,
    return
  }
  func.func @transform_0(%arg0: i32) -> (i32, i32) {
    %c0_i32 = arith.constant 0 : i32
    %c0_i32_0 = arith.constant 0 : i32
    return %arg0, %c0_i32 : i32, i32
  }
  func.func @transform_1(%arg0: i32) -> (i32, i32) {
    %c0_i32 = arith.constant 0 : i32
    %c0_i32_0 = arith.constant 0 : i32
    %c0_i32_1 = arith.constant 0 : i32
    return %c0_i32, %c0_i32_0 : i32, i32
  }
  func.func @transform_2(%arg0: i32) -> (i32, i32) {
    %c0_i32 = arith.constant 0 : i32
    %c0_i32_0 = arith.constant 0 : i32
    return %arg0, %c0_i32 : i32, i32
  }
}

</mosaic_0001>

<llo_original>
// kernel: spp_forward.1
$region0: #{spp_forward.1}
  #allocation0 [shape = 'u32[]', space=smem, size = 0x4, offset = 0x4, fixed_abs, tag = 'smem constant byte address 0x4 - core index']
  #allocation1 [shape = 'u32[144,128]{1,0:T(1,128)}', space=vmem, size = 0x12000, scoped, tag = 'internal scratch']
  %s0 = inlined_call_operand.vmem [shape: bf16[8,256], index: 0, kind: input, shape index: {}]
  %s1 = inlined_call_operand.vmem [shape: bf16[256,128], index: 1, kind: input, shape index: {}]
  %s2 = inlined_call_operand.vmem [shape: f32[8,128], index: 2, kind: output, shape index: {}]
  %s3 = sld [smem:[#allocation0]]
  $region18: #{spp_forward.1} parent=0
    _
  %s5 = ssub.s32 1, %s3
  %s6 = scalar_select 0, %s5, %s3
  // Predicated region
  $region2: #{spp_forward.1} parent=0 // pred_check
    _
  $region3: #{spp_forward.1} parent=0 // pred_check_branch
    %8 = sbr.rel (0) target = $region5
  $region4: #{spp_forward.1} parent=0 // pred_region
    _
  $region5: #{spp_forward.1} parent=0 // pred_fallthru
    _
  // Predicated region
  $region6: #{spp_forward.1} parent=0 // pred_check
    _
  $region7: #{spp_forward.1} parent=0 // pred_check_branch
    %10 = sbr.rel (0) target = $region9
  $region8: #{spp_forward.1} parent=0 // pred_region
    _
  $region9: #{spp_forward.1} parent=0 // pred_fallthru
    _
  %v12 = vld [vmem:[%s0] sm:$0xff]
  %v13 = vld [vmem:[%s1] sm:$0xf]
  %v14 = vld [vmem:[%s1 + $0x4] sm:$0xf]
  %v15 = vld [vmem:[%s1 + $0x8] sm:$0xf]
  %v16 = vld [vmem:[%s1 + $0xc] sm:$0xf]
  %v17 = vld [vmem:[%s1 + $0x10] sm:$0xf]
  %v18 = vld [vmem:[%s1 + $0x14] sm:$0xf]
  %v19 = vld [vmem:[%s1 + $0x18] sm:$0xf]
  %v20 = vld [vmem:[%s1 + $0x1c] sm:$0xf]
  %v21 = vld [vmem:[%s1 + $0x20] sm:$0xf]
  %v22 = vld [vmem:[%s1 + $0x24] sm:$0xf]
  %v23 = vld [vmem:[%s1 + $0x28] sm:$0xf]
  %v24 = vld [vmem:[%s1 + $0x2c] sm:$0xf]
  %v25 = vld [vmem:[%s1 + $0x30] sm:$0xf]
  %v26 = vld [vmem:[%s1 + $0x34] sm:$0xf]
  %v27 = vld [vmem:[%s1 + $0x38] sm:$0xf]
  %v28 = vld [vmem:[%s1 + $0x3c] sm:$0xf]
  %v29 = vld [vmem:[%s1 + $0x40] sm:$0xf]
  %v30 = vld [vmem:[%s1 + $0x44] sm:$0xf]
  %v31 = vld [vmem:[%s1 + $0x48] sm:$0xf]
  %v32 = vld [vmem:[%s1 + $0x4c] sm:$0xf]
  %v33 = vld [vmem:[%s1 + $0x50] sm:$0xf]
  %v34 = vld [vmem:[%s1 + $0x54] sm:$0xf]
  %v35 = vld [vmem:[%s1 + $0x58] sm:$0xf]
  %v36 = vld [vmem:[%s1 + $0x5c] sm:$0xf]
  %v37 = vld [vmem:[%s1 + $0x60] sm:$0xf]
  %v38 = vld [vmem:[%s1 + $0x64] sm:$0xf]
  %v39 = vld [vmem:[%s1 + $0x68] sm:$0xf]
  %v40 = vld [vmem:[%s1 + $0x6c] sm:$0xf]
  %v41 = vld [vmem:[%s1 + $0x70] sm:$0xf]
  %v42 = vld [vmem:[%s1 + $0x74] sm:$0xf]
  %v43 = vld [vmem:[%s1 + $0x78] sm:$0xf]
  %v44 = vld [vmem:[%s1 + $0x7c] sm:$0xf]
  %v46 = vunpack.c.l.b16 %v12
  %v47 = vunpack.c.h.b16 %v12
  %v48 = vpack.c.b16 %v46, %v46
  %v49 = vpack.c.b16 %v47, %v47
  %v84 = vunpack.c.l.b16 %v13
  %v85 = vunpack.c.l.b16 %v14
  %v86 = vunpack.c.l.b16 %v15
  %v87 = vunpack.c.l.b16 %v16
  %v88 = vunpack.c.l.b16 %v17
  %v89 = vunpack.c.l.b16 %v18
  %v90 = vunpack.c.l.b16 %v19
  %v91 = vunpack.c.l.b16 %v20
  %v92 = vunpack.c.l.b16 %v21
  %v93 = vunpack.c.l.b16 %v22
  %v94 = vunpack.c.l.b16 %v23
  %v95 = vunpack.c.l.b16 %v24
  %v96 = vunpack.c.l.b16 %v25
  %v97 = vunpack.c.l.b16 %v26
  %v98 = vunpack.c.l.b16 %v27
  %v99 = vunpack.c.l.b16 %v28
  %v100 = vunpack.c.l.b16 %v29
  %v101 = vunpack.c.l.b16 %v30
  %v102 = vunpack.c.l.b16 %v31
  %v103 = vunpack.c.l.b16 %v32
  %v104 = vunpack.c.l.b16 %v33
  %v105 = vunpack.c.l.b16 %v34
  %v106 = vunpack.c.l.b16 %v35
  %v107 = vunpack.c.l.b16 %v36
  %v108 = vunpack.c.l.b16 %v37
  %v109 = vunpack.c.l.b16 %v38
  %v110 = vunpack.c.l.b16 %v39
  %v111 = vunpack.c.l.b16 %v40
  %v112 = vunpack.c.l.b16 %v41
  %v113 = vunpack.c.l.b16 %v42
  %v114 = vunpack.c.l.b16 %v43
  %v115 = vunpack.c.l.b16 %v44
  %v116 = vpack.c.b16 %v85, %v84
  %v117 = vpack.c.b16 %v87, %v86
  %v118 = vpack.c.b16 %v89, %v88
  %v119 = vpack.c.b16 %v91, %v90
  %v120 = vpack.c.b16 %v93, %v92
  %v121 = vpack.c.b16 %v95, %v94
  %v122 = vpack.c.b16 %v97, %v96
  %v123 = vpack.c.b16 %v99, %v98
  %v124 = vpack.c.b16 %v101, %v100
  %v125 = vpack.c.b16 %v103, %v102
  %v126 = vpack.c.b16 %v105, %v104
  %v127 = vpack.c.b16 %v107, %v106
  %v128 = vpack.c.b16 %v109, %v108
  %v129 = vpack.c.b16 %v111, %v110
  %v130 = vpack.c.b16 %v113, %v112
  %v131 = vpack.c.b16 %v115, %v114
  %148 = vmatprep.subr.bf16.mxu0 0
  %149 = vmatpush1.bf16.msra.mxu0 %v123
  %150 = vmatprep.subr.bf16.mxu0 0
  %151 = vmatpush1.bf16.msra.mxu0 %v122
  %152 = vmatprep.subr.bf16.mxu0 0
  %153 = vmatpush1.bf16.msra.mxu0 %v121
  %154 = vmatprep.subr.bf16.mxu0 0
  %155 = vmatpush1.bf16.msra.mxu0 %v120
  %156 = vmatprep.subr.bf16.mxu0 0
  %157 = vmatpush1.bf16.msra.mxu0 %v119
  %158 = vmatprep.subr.bf16.mxu0 0
  %159 = vmatpush1.bf16.msra.mxu0 %v118
  %160 = vmatprep.subr.bf16.mxu0 0
  %161 = vmatpush1.bf16.msra.mxu0 %v117
  %162 = vmatprep.subr.bf16.mxu0 0
  %163 = vmatpush1.bf16.msra.mxu0 %v116
  %164 = vmatprep.subr.bf16.mxu0 0
  %165 = vmatpush2.bf16.msra.mxu0 %v131
  %166 = vmatprep.subr.bf16.mxu0 0
  %167 = vmatpush2.bf16.msra.mxu0 %v130
  %168 = vmatprep.subr.bf16.mxu0 0
  %169 = vmatpush2.bf16.msra.mxu0 %v129
  %170 = vmatprep.subr.bf16.mxu0 0
  %171 = vmatpush2.bf16.msra.mxu0 %v128
  %172 = vmatprep.subr.bf16.mxu0 0
  %173 = vmatpush2.bf16.msra.mxu0 %v127
  %174 = vmatprep.subr.bf16.mxu0 0
  %175 = vmatpush2.bf16.msra.mxu0 %v126
  %176 = vmatprep.subr.bf16.mxu0 0
  %177 = vmatpush2.bf16.msra.mxu0 %v125
  %178 = vmatprep.subr.bf16.mxu0 0
  %179 = vmatpush2.bf16.msra.mxu0 %v124
  %180 = vmatprep.mubr.bf16.mxu0 %v49
  %181 = vmatmul.mubr.bf16.gmra.mxu0 %v48
  %v182 = vpop.f32.mrf.mxu0
  %v183 = vadd.f32 0.0, %v182
  %v184 = vpop.f32.mrf.mxu0
  %v185 = vpop.f32.mrf.mxu0
  %v186 = vpop.f32.mrf.mxu0
  %187 = vdwg.mxu0
  %188 = vst [vmem:[%s2] sm:$0xff] %v183
  // Predicated region
  $region10: #{spp_forward.1} parent=0 // pred_check
    _
  $region11: #{spp_forward.1} parent=0 // pred_check_branch
    %190 = sbr.rel (0) target = $region13
  $region12: #{spp_forward.1} parent=0 // pred_region
    _
  $region13: #{spp_forward.1} parent=0 // pred_fallthru
    _
  // Predicated region
  $region14: #{spp_forward.1} parent=0 // pred_check
    _
  $region15: #{spp_forward.1} parent=0 // pred_check_branch
    %192 = sbr.rel (0) target = $region17
  $region16: #{spp_forward.1} parent=0 // pred_region
    _
  $region17: #{spp_forward.1} parent=0 // pred_fallthru
    _

</llo_original>
